<compile_context>
chip_gen: v7x
topology: tpu7x:2x2x1
jax: 0.10.0
libtpu: 0.0.40
codegen_flags: <defaults>
</compile_context>

<pallas_src>
import jax
import jax.numpy as jnp
from jax.experimental import pallas as pl
from jax.experimental.pallas import tpu as pltpu


def _pfld_loss_kernel(lgt_ref, egt_ref, ang_ref, lmk_ref, wsum_ref, l2sum_ref):
    # wsum_ref / l2sum_ref are [1, Bt] accumulators, resident across the grid.
    @pl.when(pl.program_id(0) == 0)
    def _init():
        wsum_ref[...] = jnp.zeros_like(wsum_ref)
        l2sum_ref[...] = jnp.zeros_like(l2sum_ref)

    # Load native dtype, compute in f32 (v5e VPU/EUP have no bf16 math).
    ang = ang_ref[...].astype(jnp.float32)   # [A, Bt]
    egt = egt_ref[...].astype(jnp.float32)   # [A, Bt]
    lgt = lgt_ref[...].astype(jnp.float32)   # [L, Bt]
    lmk = lmk_ref[...].astype(jnp.float32)   # [L, Bt]

    # Batch on the lane axis -> per-sample sums are sublane reduces.
    weight_angle = jnp.sum(1.0 - jnp.cos(ang - egt), axis=0, keepdims=True)  # [1, Bt]
    d = lgt - lmk
    l2_distant = jnp.sum(d * d, axis=0, keepdims=True)                       # [1, Bt]

    wsum_ref[...] += weight_angle * l2_distant
    l2sum_ref[...] += l2_distant


def _choose_batch_tile(L, A, B, itemsize, vmem_budget_bytes=8 * 1024 * 1024):
    """Largest multiple-of-128 batch tile fitting a conservative VMEM budget."""
    # Per batch column: 2 landmark-sized + 2 angle-sized inputs, double-buffered
    # by the BlockSpec pipeline, plus two resident f32 accumulator rows.
    per_col = 2 * 2 * (L + A) * itemsize + 2 * 4
    bt = (vmem_budget_bytes // per_col) // 128 * 128
    bt = max(128, min(bt, 2048))
    # Never larger than the lane-padded batch itself.
    bt = min(bt, pl.cdiv(B, 128) * 128)
    return bt


def pfld_loss(landmark_gt, euler_angle_gt, angle, landmarks, *, batch_tile=None):
    """Returns (weighted_l2_loss, l2_loss) matching PFLDLoss.forward."""
    B, L = landmark_gt.shape
    A = euler_angle_gt.shape[1]

    if batch_tile is None:
        batch_tile = _choose_batch_tile(L, A, B, landmark_gt.dtype.itemsize)
    bt = batch_tile
    padded_b = pl.cdiv(B, bt) * bt
    grid = (padded_b // bt,)

    def pad_t(x):
        # [B, D] -> [D, padded_b]: batch on the lane axis, zero-padded columns.
        return jnp.pad(x, ((0, padded_b - B), (0, 0))).T

    lgt = pad_t(landmark_gt)      # [L, padded_b], native dtype
    egt = pad_t(euler_angle_gt)   # [A, padded_b]
    ang = pad_t(angle)            # [A, padded_b]
    lmk = pad_t(landmarks)        # [L, padded_b]

    sum_w, sum_l2 = pl.pallas_call(
        _pfld_loss_kernel,
        out_shape=(
            jax.ShapeDtypeStruct((1, bt), jnp.float32),
            jax.ShapeDtypeStruct((1, bt), jnp.float32),
        ),
        grid=grid,
        in_specs=[
            pl.BlockSpec((L, bt), lambda i: (0, i)),  # landmark_gt
            pl.BlockSpec((A, bt), lambda i: (0, i)),  # euler_angle_gt
            pl.BlockSpec((A, bt), lambda i: (0, i)),  # angle
            pl.BlockSpec((L, bt), lambda i: (0, i)),  # landmarks
        ],
        out_specs=(
            pl.BlockSpec((1, bt), lambda i: (0, 0)),  # accumulated over grid
            pl.BlockSpec((1, bt), lambda i: (0, 0)),
        ),
        compiler_params=pltpu.CompilerParams(
            dimension_semantics=("arbitrary",)),
    )(lgt, egt, ang, lmk)

    # Tiny (Bt-element) lane reduce + mean normalization, fused by XLA.
    inv_b = jnp.float32(1.0 / B)
    return jnp.sum(sum_w) * inv_b, jnp.sum(sum_l2) * inv_b


def _reference(landmark_gt, euler_angle_gt, angle, landmarks):
    lgt = landmark_gt.astype(jnp.float32)
    egt = euler_angle_gt.astype(jnp.float32)
    ang = angle.astype(jnp.float32)
    lmk = landmarks.astype(jnp.float32)
    weight_angle = jnp.sum(1.0 - jnp.cos(ang - egt), axis=1)
    l2_distant = jnp.sum((lgt - lmk) ** 2, axis=1)
    return jnp.mean(weight_angle * l2_distant), jnp.mean(l2_distant)


if __name__ == "__main__":
    # --- small smoke test (single tile) ---
    B, L, A = 8, 16, 3
    k1, k2, k3, k4 = jax.random.split(jax.random.PRNGKey(0), 4)
    landmark_gt = jax.random.normal(k1, (B, L), dtype=jnp.float32)
    euler_angle_gt = jax.random.normal(k2, (B, A), dtype=jnp.float32)
    angle = jax.random.normal(k3, (B, A), dtype=jnp.float32)
    landmarks = jax.random.normal(k4, (B, L), dtype=jnp.float32)

    w_loss, l2_loss = pfld_loss(landmark_gt, euler_angle_gt, angle, landmarks)
    jax.block_until_ready((w_loss, l2_loss))
    ref_w, ref_l2 = _reference(landmark_gt, euler_angle_gt, angle, landmarks)
    assert jnp.allclose(w_loss, ref_w, rtol=1e-4, atol=1e-5), (w_loss, ref_w)
    assert jnp.allclose(l2_loss, ref_l2, rtol=1e-4, atol=1e-5), (l2_loss, ref_l2)

    # --- realistic PFLD shapes (98 landmarks * 2 coords), non-multiple batch,
    #     forced small tile to exercise multi-tile accumulation + zero padding ---
    B2, L2 = 300, 196
    k5, k6, k7, k8 = jax.random.split(jax.random.PRNGKey(1), 4)
    lgt2 = jax.random.normal(k5, (B2, L2), dtype=jnp.float32)
    egt2 = jax.random.normal(k6, (B2, A), dtype=jnp.float32)
    ang2 = jax.random.normal(k7, (B2, A), dtype=jnp.float32)
    lmk2 = jax.random.normal(k8, (B2, L2), dtype=jnp.float32)

    w2, l22 = pfld_loss(lgt2, egt2, ang2, lmk2, batch_tile=128)
    jax.block_until_ready((w2, l22))
    rw2, rl22 = _reference(lgt2, egt2, ang2, lmk2)
    assert jnp.allclose(w2, rw2, rtol=1e-4, atol=1e-4), (w2, rw2)
    assert jnp.allclose(l22, rl22, rtol=1e-4, atol=1e-4), (l22, rl22)

    print("KERNEL_OK")
</pallas_src>

<mosaic_0001>
module attributes {stable_mosaic.version = 11 : i64} {
  func.func @_pfld_loss_kernel(%arg0: i32, %arg1: memref<16x128xf32, #tpu.memory_space<vmem>>, %arg2: memref<3x128xf32, #tpu.memory_space<vmem>>, %arg3: memref<3x128xf32, #tpu.memory_space<vmem>>, %arg4: memref<16x128xf32, #tpu.memory_space<vmem>>, %arg5: memref<1x128xf32, #tpu.memory_space<vmem>>, %arg6: memref<1x128xf32, #tpu.memory_space<vmem>>) attributes {dimension_semantics = [#tpu.dimension_semantics<arbitrary>], iteration_bounds = array<i64: 1>, scalar_prefetch = 0 : i64, scratch_operands = 0 : i64, tpu.core_type = #tpu.core_type<tc>, window_params = [{transform_indices = @transform_0, window_bounds = array<i64: 16, 128>}, {transform_indices = @transform_1, window_bounds = array<i64: 3, 128>}, {transform_indices = @transform_2, window_bounds = array<i64: 3, 128>}, {transform_indices = @transform_3, window_bounds = array<i64: 16, 128>}, {pipeline_mode = #tpu.pipeline_mode<synchronous>, transform_indices = @transform_4, window_bounds = array<i64: 1, 128>}, {pipeline_mode = #tpu.pipeline_mode<synchronous>, transform_indices = @transform_5, window_bounds = array<i64: 1, 128>}]} {
    %c0_i32 = arith.constant 0 : i32
    %0 = arith.cmpi eq, %arg0, %c0_i32 : i32
    %1 = arith.extui %0 : i1 to i32
    %c0_i32_0 = arith.constant 0 : i32
    %2 = arith.cmpi ne, %1, %c0_i32_0 : i32
    scf.if %2 {
      %cst_18 = arith.constant 0.000000e+00 : f32
      %24 = vector.broadcast %cst_18 : f32 to vector<1x128xf32>
      %c0_19 = arith.constant 0 : index
      %c0_20 = arith.constant 0 : index
      %25 = vector.load %arg5[%c0_19, %c0_20] : memref<1x128xf32, #tpu.memory_space<vmem>>, vector<1x128xf32>
      tpu.vector_store %arg5[%c0_19, %c0_20], %24 {strides = array<i32>} : memref<1x128xf32, #tpu.memory_space<vmem>>, vector<1x128xf32>,
      %cst_21 = arith.constant 0.000000e+00 : f32
      %26 = vector.broadcast %cst_21 : f32 to vector<1x128xf32>
      %c0_22 = arith.constant 0 : index
      %c0_23 = arith.constant 0 : index
      %27 = vector.load %arg6[%c0_22, %c0_23] : memref<1x128xf32, #tpu.memory_space<vmem>>, vector<1x128xf32>
      tpu.vector_store %arg6[%c0_22, %c0_23], %26 {strides = array<i32>} : memref<1x128xf32, #tpu.memory_space<vmem>>, vector<1x128xf32>,
    } else {
    }
    %c0 = arith.constant 0 : index
    %c0_1 = arith.constant 0 : index
    %3 = vector.load %arg3[%c0, %c0_1] : memref<3x128xf32, #tpu.memory_space<vmem>>, vector<3x128xf32>
    %c0_2 = arith.constant 0 : index
    %c0_3 = arith.constant 0 : index
    %4 = vector.load %arg2[%c0_2, %c0_3] : memref<3x128xf32, #tpu.memory_space<vmem>>, vector<3x128xf32>
    %c0_4 = arith.constant 0 : index
    %c0_5 = arith.constant 0 : index
    %5 = vector.load %arg1[%c0_4, %c0_5] : memref<16x128xf32, #tpu.memory_space<vmem>>, vector<16x128xf32>
    %c0_6 = arith.constant 0 : index
    %c0_7 = arith.constant 0 : index
    %6 = vector.load %arg4[%c0_6, %c0_7] : memref<16x128xf32, #tpu.memory_space<vmem>>, vector<16x128xf32>
    %7 = arith.subf %3, %4 : vector<3x128xf32>
    %8 = math.cos %7 : vector<3x128xf32>
    %cst = arith.constant 1.000000e+00 : f32
    %9 = vector.broadcast %cst : f32 to vector<3x128xf32>
    %10 = arith.subf %9, %8 : vector<3x128xf32>
    %cst_8 = arith.constant dense<0.000000e+00> : vector<128xf32>
    %11 = vector.multi_reduction <add>, %10, %cst_8 [0] : vector<3x128xf32> to vector<128xf32>
    %12 = vector.shape_cast %11 : vector<128xf32> to vector<1x128xf32>
    %13 = arith.subf %5, %6 : vector<16x128xf32>
    %14 = arith.mulf %13, %13 : vector<16x128xf32>
    %cst_9 = arith.constant dense<0.000000e+00> : vector<128xf32>
    %15 = vector.multi_reduction <add>, %14, %cst_9 [0] : vector<16x128xf32> to vector<128xf32>
    %16 = vector.shape_cast %15 : vector<128xf32> to vector<1x128xf32>
    %c0_10 = arith.constant 0 : index
    %c0_11 = arith.constant 0 : index
    %17 = vector.load %arg5[%c0_10, %c0_11] : memref<1x128xf32, #tpu.memory_space<vmem>>, vector<1x128xf32>
    %18 = arith.mulf %12, %16 : vector<1x128xf32>
    %19 = arith.addf %17, %18 : vector<1x128xf32>
    %c0_12 = arith.constant 0 : index
    %c0_13 = arith.constant 0 : index
    %20 = vector.load %arg5[%c0_12, %c0_13] : memref<1x128xf32, #tpu.memory_space<vmem>>, vector<1x128xf32>
    tpu.vector_store %arg5[%c0_12, %c0_13], %19 {strides = array<i32>} : memref<1x128xf32, #tpu.memory_space<vmem>>, vector<1x128xf32>,
    %c0_14 = arith.constant 0 : index
    %c0_15 = arith.constant 0 : index
    %21 = vector.load %arg6[%c0_14, %c0_15] : memref<1x128xf32, #tpu.memory_space<vmem>>, vector<1x128xf32>
    %22 = arith.addf %21, %16 : vector<1x128xf32>
    %c0_16 = arith.constant 0 : index
    %c0_17 = arith.constant 0 : index
    %23 = vector.load %arg6[%c0_16, %c0_17] : memref<1x128xf32, #tpu.memory_space<vmem>>, vector<1x128xf32>
    tpu.vector_store %arg6[%c0_16, %c0_17], %22 {strides = array<i32>} : memref<1x128xf32, #tpu.memory_space<vmem>>, vector<1x128xf32>,
    return
  }
  func.func @transform_0(%arg0: i32) -> (i32, i32) {
    %c0_i32 = arith.constant 0 : i32
    %c0_i32_0 = arith.constant 0 : i32
    return %c0_i32, %arg0 : i32, i32
  }
  func.func @transform_1(%arg0: i32) -> (i32, i32) {
    %c0_i32 = arith.constant 0 : i32
    %c0_i32_0 = arith.constant 0 : i32
    return %c0_i32, %arg0 : i32, i32
  }
  func.func @transform_2(%arg0: i32) -> (i32, i32) {
    %c0_i32 = arith.constant 0 : i32
    %c0_i32_0 = arith.constant 0 : i32
    return %c0_i32, %arg0 : i32, i32
  }
  func.func @transform_3(%arg0: i32) -> (i32, i32) {
    %c0_i32 = arith.constant 0 : i32
    %c0_i32_0 = arith.constant 0 : i32
    return %c0_i32, %arg0 : i32, i32
  }
  func.func @transform_4(%arg0: i32) -> (i32, i32) {
    %c0_i32 = arith.constant 0 : i32
    %c0_i32_0 = arith.constant 0 : i32
    %c0_i32_1 = arith.constant 0 : i32
    return %c0_i32, %c0_i32_0 : i32, i32
  }
  func.func @transform_5(%arg0: i32) -> (i32, i32) {
    %c0_i32 = arith.constant 0 : i32
    %c0_i32_0 = arith.constant 0 : i32
    %c0_i32_1 = arith.constant 0 : i32
    return %c0_i32, %c0_i32_0 : i32, i32
  }
}

</mosaic_0001>

<llo_original>
// kernel: tpu_custom_call.1
$region0: #{tpu_custom_call.1}
  #allocation0 [shape = 'u32[]', space=smem, size = 0x4, offset = 0x4, fixed_abs, tag = 'smem constant byte address 0x4 - core index']
  #allocation1 [shape = 'u32[144,128]{1,0:T(1,128)}', space=vmem, size = 0x12000, scoped, tag = 'internal scratch']
  %s0 = inlined_call_operand.hbm [shape: f32[16,128], index: 0, kind: input, shape index: {}]
  %s1 = inlined_call_operand.hbm [shape: f32[3,128], index: 1, kind: input, shape index: {}]
  %s2 = inlined_call_operand.vmem [shape: f32[3,128], index: 2, kind: input, shape index: {}]
  %s3 = inlined_call_operand.hbm [shape: f32[16,128], index: 3, kind: input, shape index: {}]
  %s4 = inlined_call_operand.hbm [shape: f32[1,128], index: 4, kind: output, shape index: {0}]
  %s5 = inlined_call_operand.hbm [shape: f32[1,128], index: 5, kind: output, shape index: {1}]
  %6 = xla_tuple %s4, %s5
  %s7 = sld [smem:[#allocation0]]
  $region50: #{tpu_custom_call.1} parent=0
    _
  %s9 = ssub.s32 1, %s7
  %s10 = scalar_select 0, %s9, %s7
  $region1: #{tpu_custom_call.1} parent=0
    #allocation2 [shape = 'u8[8192]{0}', space=vmem, size = 0x2000, scoped, tag = 'input window, operand 0, single buffered']
    #allocation3 [shape = 's32[1]{0}', space=sflag, size = 0x4, scoped, tag = 'scoped memory for tpu_custom_call.1']
    #allocation4 [shape = 's32[1]{0}', space=sflag, size = 0x4, scoped, tag = 'scoped memory for tpu_custom_call.1']
    #allocation5 [shape = 'u8[2048]{0}', space=vmem, size = 0x800, scoped, tag = 'input window, operand 1, single buffered']
    #allocation6 [shape = 's32[1]{0}', space=sflag, size = 0x4, scoped, tag = 'scoped memory for tpu_custom_call.1']
    #allocation7 [shape = 'u8[8192]{0}', space=vmem, size = 0x2000, scoped, tag = 'input window, operand 3, single buffered']
    #allocation8 [shape = 'u8[512]{0}', space=vmem, size = 0x400, scoped, tag = 'output window, operand 0, single buffered']
    #allocation9 [shape = 'u8[512]{0}', space=vmem, size = 0x400, scoped, tag = 'output window, operand 1, single buffered']
    #allocation10 [shape = 's32[1]{0}', space=sflag, size = 0x4, scoped, tag = 'scoped memory for tpu_custom_call.1']
    %11 = vsyncpa [#allocation3], 0
    %12 = vsyncpa [#allocation6], 0
    %13 = vsyncpa [#allocation4], 0
    %14 = vsyncpa [#allocation10], 0
    // Predicated region
    $region2: #{tpu_custom_call.1} parent=1 // pred_check
      _
    $region3: #{tpu_custom_call.1} parent=1 // pred_check_branch
      %16 = sbr.rel (0) target = $region5
    $region4: #{tpu_custom_call.1} parent=1 // pred_region
      %s18 = ssub.s32 256, 256
      %19 = vsyncadd [#allocation3], %s18
      %s20 = sshll.u32 [#allocation2], 4
      %s21 = int_to_ptr.vmem [resolvable:$true] %s20
      %26 = dma.hbm_to_vmem [thread:$0]  %s0, 256, %s21, [#allocation3], 128, 128, 8
    $region5: #{tpu_custom_call.1} parent=1 // pred_fallthru
      _
    // Predicated region
    $region6: #{tpu_custom_call.1} parent=1 // pred_check
      _
    $region7: #{tpu_custom_call.1} parent=1 // pred_check_branch
      %28 = sbr.rel (0) target = $region9
    $region8: #{tpu_custom_call.1} parent=1 // pred_region
      %s30 = ssub.s32 64, 64
      %31 = vsyncadd [#allocation6], %s30
      %s33 = sshll.u32 [#allocation5], 4
      %s34 = int_to_ptr.vmem [resolvable:$true] %s33
      %36 = dma.hbm_to_vmem [thread:$0]  %s1, 64, %s34, [#allocation6]
    $region9: #{tpu_custom_call.1} parent=1 // pred_fallthru
      _
    // Predicated region
    $region10: #{tpu_custom_call.1} parent=1 // pred_check
      _
    $region11: #{tpu_custom_call.1} parent=1 // pred_check_branch
      %38 = sbr.rel (0) target = $region13
    $region12: #{tpu_custom_call.1} parent=1 // pred_region
      _
    $region13: #{tpu_custom_call.1} parent=1 // pred_fallthru
      _
    // Predicated region
    $region14: #{tpu_custom_call.1} parent=1 // pred_check
      _
    $region15: #{tpu_custom_call.1} parent=1 // pred_check_branch
      %40 = sbr.rel (0) target = $region17
    $region16: #{tpu_custom_call.1} parent=1 // pred_region
      %s42 = ssub.s32 256, 256
      %43 = vsyncadd [#allocation6], %s42
      %s44 = sshll.u32 [#allocation7], 4
      %s45 = int_to_ptr.vmem [resolvable:$true] %s44
      %50 = dma.hbm_to_vmem [thread:$0]  %s3, 256, %s45, [#allocation6], 128, 128, 8
    $region17: #{tpu_custom_call.1} parent=1 // pred_fallthru
      _
    // Predicated region
    $region18: #{tpu_custom_call.1} parent=1 // pred_check
      _
    $region19: #{tpu_custom_call.1} parent=1 // pred_check_branch
      %52 = sbr.rel (0) target = $region21
    $region20: #{tpu_custom_call.1} parent=1 // pred_region
      %53 = dma.done [#allocation3], 256
    $region21: #{tpu_custom_call.1} parent=1 // pred_fallthru
      _
    // Predicated region
    $region22: #{tpu_custom_call.1} parent=1 // pred_check
      _
    $region23: #{tpu_custom_call.1} parent=1 // pred_check_branch
      %55 = sbr.rel (0) target = $region25
    $region24: #{tpu_custom_call.1} parent=1 // pred_region
      %56 = dma.done [#allocation6], 64
    $region25: #{tpu_custom_call.1} parent=1 // pred_fallthru
      _
    // Predicated region
    $region26: #{tpu_custom_call.1} parent=1 // pred_check
      _
    $region27: #{tpu_custom_call.1} parent=1 // pred_check_branch
      %58 = sbr.rel (0) target = $region29
    $region28: #{tpu_custom_call.1} parent=1 // pred_region
      %59 = dma.done [#allocation6], 256
    $region29: #{tpu_custom_call.1} parent=1 // pred_fallthru
      _
    %p60 = scmp.eq.s32.totalorder 0, 0
    // Predicated region
    $region30: #{tpu_custom_call.1} parent=1 // pred_check
      %p61 = pneg %p60
    $region31: #{tpu_custom_call.1} parent=1 // pred_check_branch
      %63 = sbr.rel (%p61) target = $region33
    $region32: #{tpu_custom_call.1} parent=1 // pred_region
      %64 = vst [vmem:[#allocation8] sm:$0x1] 0.0
      %65 = vst [vmem:[#allocation9] sm:$0x1] 0.0
    $region33: #{tpu_custom_call.1} parent=1 // pred_fallthru
      _
    %v66 = vld [vmem:[%s2] sm:$0x7]
    %v67 = vld [vmem:[#allocation5] sm:$0x7]
    %v68 = vld [vmem:[#allocation2] sm:$0xff]
    %v69 = vld [vmem:[#allocation2 + $0x8] sm:$0xff]
    %v70 = vld [vmem:[#allocation7] sm:$0xff]
    %v71 = vld [vmem:[#allocation7 + $0x8] sm:$0xff]
    %v72 = vsub.f32 %v66, %v67
    %v73 = vand.u32 2147483647, %v72
    %vm74 = vcmp.le.f32.partialorder %v73, 0.7853982
    %vm75 = vcmp.lt.s32.totalorder %v72, 0
    %v76 = vand.u32 %v72, 2139095040
    %v77 = vshrl.u32 %v76, 23
    %v78 = vsub.s32 %v77, 127
    %v79 = vand.u32 2147483647, %v72
    %v80 = vand.u32 %v79, 8388607
    %v81 = vor.u32 %v80, 8388608
    %v82 = vsub.s32 0, %v81
    %v83 = vadd.s32 %v78, 1
    %vm84 = vcmp.gt.s32.totalorder %v83, 0
    %v85 = vsel %vm84, %v83, 0
    %v86 = vshrl.u32 %v85, 5
    %v87 = vand.u32 %v85, 31
    %v88 = vsub.s32 32, %v87
    %v89 = vshrl.u32 683565275, %v88
    %v90 = vshll.u32 683565275, %v87
    %v91 = vshrl.u32 2475754826, %v88
    %v92 = vor.u32 %v90, %v91
    %v93 = vshll.u32 2475754826, %v87
    %v94 = vshrl.u32 2131351028, %v88
    %v95 = vor.u32 %v93, %v94
    %v96 = vshll.u32 2131351028, %v87
    %v97 = vshrl.u32 2102212464, %v88
    %v98 = vor.u32 %v96, %v97
    %v99 = vshll.u32 2102212464, %v87
    %v100 = vshrl.u32 920167782, %v88
    %v101 = vor.u32 %v99, %v100
    %v102 = vshll.u32 920167782, %v87
    %v103 = vshrl.u32 1326507024, %v88
    %v104 = vor.u32 %v102, %v103
    %vm105 = vcmp.lt.s32.totalorder %v86, 1
    %vm106 = vcmp.lt.s32.totalorder %v86, 2
    %vm107 = vcmp.lt.s32.totalorder %v86, 3
    %vm108 = vcmp.lt.s32.totalorder %v86, 4
    %v109 = vsel %vm105, %v89, %v92
    %v110 = vsel %vm108, %v98, 2102212464
    %v111 = vsel %vm107, %v95, %v110
    %v112 = vsel %vm106, %v109, %v111
    %v113 = vsel %vm105, %v92, %v95
    %v114 = vsel %vm108, %v101, 920167782
    %v115 = vsel %vm107, %v98, %v114
    %v116 = vsel %vm106, %v113, %v115
    %v117 = vsel %vm105, %v95, %v98
    %v118 = vsel %vm108, %v104, 1326507024
    %v119 = vsel %vm107, %v101, %v118
    %v120 = vsel %vm106, %v117, %v119
    %v121 = vshll.u32 %v81, 8
    %v122 = vmul.u32.u64.compose %v121, %v120
    %v123 = vextract.low.u32 %v122
    %v124 = vextract.high.u32 %v122
    %v125 = vmul.u32.u64.compose %v121, %v116
    %v126 = vextract.low.u32 %v125
    %v127 = vextract.high.u32 %v125
    %v128 = vmul.u32 %v121, %v112
    %v129 = vadd.s32 %v124, %v126
    %vm130 = vc.u32 %v124, %v126
    %v131 = vadd.s32 %v127, 1
    %v132 = vsel %vm130, %v131, %v127
    %v133 = vadd.s32 %v128, %v132
    %v134 = vadd.s32 %v133, 536870912
    %v135 = vshrl.u32 %v134, 30
    %v136 = vshll.u32 %v135, 30
    %v137 = vsub.s32 %v133, %v136
    %vm138 = vcmp.lt.s32.totalorder %v137, 0
    %v139 = vsub.s32 0, %v137
    %v140 = vsel %vm138, %v139, %v137
    %v141 = vclz %v140
    %v142 = vsub.s32 %v141, 2
    %vm143 = vcmp.gt.s32.totalorder 0, %v142
    %v144 = vsel %vm143, 0, %v142
    %v145 = vsub.s32 32, %v144
    %v146 = vshll.u32 %v137, %v144
    %v147 = vshrl.u32 %v129, %v145
    %v148 = vor.u32 %v146, %v147
    %v149 = vsub.s32 4294967266, %v144
    %v150 = vadd.s32 %v149, 127
    %v151 = vshll.u32 %v150, 23
    %v152 = vor.u32 4788187, %v151
    %v153 = vand.u32 2147483647, %v152
    %v155 = vcvt.s32.f32 %v148
    %v156 = vmul.f32 %v155, %v153
    %v157 = vxor.u32 %v156, 2147483648
    %v158 = vsel %vm75, %v157, %v156
    %v159 = vsub.s32 4, %v135
    %v160 = vsel %vm75, %v159, %v135
    %v161 = vsel %vm74, %v72, %v158
    %v162 = vsel %vm74, 0, %v160
    %v163 = vcosq.f32.pop %v161
    %v164 = vsinq.f32.pop %v161
    %vm165 = vweird.f32 %v72
    %v166 = vand.u32 %v162, 3
    %vm167 = vcmp.lt.s32.totalorder %v166, 2
    %vm168 = vcmp.eq.s32.totalorder %v166, 0
    %v169 = vxor.u32 %v164, 2147483648
    %v170 = vsel %vm168, %v163, %v169
    %vm171 = vcmp.eq.s32.totalorder %v166, 2
    %v172 = vxor.u32 %v163, 2147483648
    %v173 = vsel %vm171, %v172, %v164
    %v174 = vsel %vm167, %v170, %v173
    %v175 = vsel %vm165, nan, %v174
    %v176 = vsub.f32 1.0, %v175
    %vm177 = vcmask 1042432
    %v178 = vsel %vm177, %v176, 0.0
    %v179 = vrot.slane %v178, 4
    %v180 = vadd.f32 %v178, %v179
    %v181 = vrot.slane %v180, 2
    %v182 = vadd.f32 %v180, %v181
    %v183 = vrot.slane %v182, 1
    %v184 = vadd.f32 %v182, %v183
    %v185 = vsub.f32 %v68, %v70
    %v186 = vsub.f32 %v69, %v71
    %v187 = vmul.f32 %v185, %v185
    %v188 = vmul.f32 %v186, %v186
    %v189 = vadd.f32 %v187, %v188
    %v190 = vrot.slane %v189, 4
    %v191 = vadd.f32 %v189, %v190
    %v192 = vrot.slane %v191, 2
    %v193 = vadd.f32 %v191, %v192
    %v194 = vrot.slane %v193, 1
    %v195 = vadd.f32 %v193, %v194
    %v196 = vld [vmem:[#allocation8] sm:$0x1]
    %v197 = vmul.f32 %v184, %v195
    %v198 = vadd.f32 %v196, %v197
    %199 = vst [vmem:[#allocation8] sm:$0x1] %v198
    %v200 = vld [vmem:[#allocation9] sm:$0x1]
    %v201 = vadd.f32 %v200, %v195
    %202 = vst [vmem:[#allocation9] sm:$0x1] %v201
    // Predicated region
    $region34: #{tpu_custom_call.1} parent=1 // pred_check
      _
    $region35: #{tpu_custom_call.1} parent=1 // pred_check_branch
      %204 = sbr.rel (0) target = $region37
    $region36: #{tpu_custom_call.1} parent=1 // pred_region
      %s206 = ssub.s32 16, 16
      %207 = vsyncadd [#allocation4], %s206
      %s209 = sshll.u32 [#allocation8], 4
      %s210 = int_to_ptr.vmem [resolvable:$true] %s209
      %212 = dma.vmem_to_hbm [thread:$0]  %s210, 16, %s4, [#allocation4]
    $region37: #{tpu_custom_call.1} parent=1 // pred_fallthru
      _
    // Predicated region
    $region38: #{tpu_custom_call.1} parent=1 // pred_check
      _
    $region39: #{tpu_custom_call.1} parent=1 // pred_check_branch
      %214 = sbr.rel (0) target = $region41
    $region40: #{tpu_custom_call.1} parent=1 // pred_region
      %s216 = ssub.s32 16, 16
      %217 = vsyncadd [#allocation10], %s216
      %s219 = sshll.u32 [#allocation9], 4
      %s220 = int_to_ptr.vmem [resolvable:$true] %s219
      %222 = dma.vmem_to_hbm [thread:$0]  %s220, 16, %s5, [#allocation10]
    $region41: #{tpu_custom_call.1} parent=1 // pred_fallthru
      _
    // Predicated region
    $region42: #{tpu_custom_call.1} parent=1 // pred_check
      _
    $region43: #{tpu_custom_call.1} parent=1 // pred_check_branch
      %224 = sbr.rel (0) target = $region45
    $region44: #{tpu_custom_call.1} parent=1 // pred_region
      %225 = dma.done [#allocation4], 16
    $region45: #{tpu_custom_call.1} parent=1 // pred_fallthru
      _
    // Predicated region
    $region46: #{tpu_custom_call.1} parent=1 // pred_check
      _
    $region47: #{tpu_custom_call.1} parent=1 // pred_check_branch
      %227 = sbr.rel (0) target = $region49
    $region48: #{tpu_custom_call.1} parent=1 // pred_region
      %228 = dma.done [#allocation10], 16
    $region49: #{tpu_custom_call.1} parent=1 // pred_fallthru
      _
    %229 = vsyncpa [#allocation3], 1
    %230 = vsyncpa [#allocation6], 1
    %231 = vsyncpa [#allocation4], 1
    %232 = vsyncpa [#allocation10], 1

</llo_original>
